<compile_context>
chip_gen: v7x
topology: tpu7x:2x2x1
jax: 0.10.0
libtpu: 0.0.40
codegen_flags: <defaults>
</compile_context>

<pallas_src>
import math
import functools

import jax
import jax.numpy as jnp
from jax import lax
from jax.experimental import pallas as pl
from jax.experimental.pallas import tpu as pltpu


# ----------------------------------------------------------------------------
# Kernel
# ----------------------------------------------------------------------------
def _embedding_onehot_kernel(ids_ref, table_ref, out_ref, acc_ref, *,
                             scale, num_chunks):
    """One grid step = (token block i, vocab chunk c).

    ids_ref:   (T, 1)        int32 token ids of this block (VMEM)
    table_ref: (VC, d_model) vocab chunk of the embedding table (VMEM)
    out_ref:   (T, d_model)  output block (same block for every c)
    acc_ref:   (T, d_model)  f32 accumulator scratch (used only if num_chunks>1)
    """
    c = pl.program_id(1)
    t_blk = ids_ref.shape[0]
    vc = table_ref.shape[0]

    # Gather-as-matmul: one_hot(ids) @ table_chunk on the MXU.  Ids that do not
    # fall in this vocab chunk give an all-zero one-hot row, so summing the
    # partial products over chunks yields exactly the gathered embedding rows.
    local = ids_ref[...] - c * vc                                    # (T, 1)
    iota = lax.broadcasted_iota(jnp.int32, (t_blk, vc), 1)           # (T, VC)
    onehot = (iota == local).astype(table_ref.dtype)                 # (T, VC)
    part = jnp.dot(onehot, table_ref[...],
                   preferred_element_type=jnp.float32)               # (T, d) f32

    if num_chunks == 1:
        if scale != 1.0:
            part = part * scale
        out_ref[...] = part.astype(out_ref.dtype)
    else:
        @pl.when(c == 0)
        def _():
            acc_ref[...] = jnp.zeros_like(acc_ref)

        acc_ref[...] += part

        @pl.when(c == num_chunks - 1)
        def _():
            res = acc_ref[...]
            if scale != 1.0:
                res = res * scale
            out_ref[...] = res.astype(out_ref.dtype)


# ----------------------------------------------------------------------------
# Wrapper (Embeddings.forward equivalent)
# ----------------------------------------------------------------------------
def embeddings_forward(token_ids, table, *, scale_embedding=True,
                       block_tokens=256, max_vocab_chunk=2048):
    """token_ids: int array (any shape, e.g. (B, S)); table: (vocab, d_model).

    Returns token_ids.shape + (d_model,) embeddings, scaled by sqrt(d_model)
    when scale_embedding is True (matches the PyTorch module's forward).
    """
    vocab, d_model = table.shape
    n = int(math.prod(token_ids.shape))
    scale = float(math.sqrt(d_model)) if scale_embedding else 1.0
    itemsize = jnp.dtype(table.dtype).itemsize

    # ---- token-block size: multiple of 8 sublanes -> dense output stores ----
    T = max(8, min((int(block_tokens) // 8) * 8, ((n + 7) // 8) * 8))
    n_pad = -(-n // T) * T

    # Clip ids (nn.Embedding would raise on OOB; here OOB -> zero one-hot row).
    flat_ids = jnp.clip(token_ids.reshape(-1).astype(jnp.int32), 0, vocab - 1)
    if n_pad != n:
        flat_ids = jnp.pad(flat_ids, (0, n_pad - n))      # pad with a valid id
    ids2d = flat_ids.reshape(n_pad, 1)

    # ---- vocab chunking: keep each pipelined table chunk small enough -------
    if vocab <= int(max_vocab_chunk) and vocab * d_model * itemsize <= (12 << 20):
        VC, num_chunks, table_p = vocab, 1, table
    else:
        cap = (8 << 20) // max(1, d_model * itemsize)      # <= ~8 MiB per chunk
        VC = max(8, min(int(max_vocab_chunk), (cap // 8) * 8))
        v_pad = -(-vocab // VC) * VC
        table_p = (jnp.pad(table, ((0, v_pad - vocab), (0, 0)))
                   if v_pad != vocab else table)
        num_chunks = v_pad // VC

    # ---- VMEM budget (double-buffered inputs/outputs + scratch + temps) -----
    vmem_est = (2 * VC * d_model * itemsize      # table chunk (double-buffered)
                + 2 * T * d_model * itemsize     # output block (double-buffered)
                + T * d_model * 4                # f32 accumulator scratch
                + 2 * T * VC * 4                 # one-hot / iota temporaries
                + 2 * T * 128 * 4                # ids block (lane-padded)
                + (6 << 20))                     # margin
    vmem_limit = int(min(max(vmem_est, 24 << 20), 48 << 20))

    kernel = functools.partial(_embedding_onehot_kernel,
                               scale=scale, num_chunks=num_chunks)

    out_flat = pl.pallas_call(
        kernel,
        out_shape=jax.ShapeDtypeStruct((n_pad, d_model), table.dtype),
        grid_spec=pltpu.PrefetchScalarGridSpec(
            num_scalar_prefetch=0,
            grid=(n_pad // T, num_chunks),
            in_specs=[
                pl.BlockSpec((T, 1), lambda i, c: (i, 0)),            # ids
                pl.BlockSpec((VC, d_model), lambda i, c: (c, 0)),     # table chunk
            ],
            out_specs=pl.BlockSpec((T, d_model), lambda i, c: (i, 0)),
            scratch_shapes=[pltpu.VMEM((T, d_model), jnp.float32)],
        ),
        compiler_params=pltpu.CompilerParams(
            dimension_semantics=("parallel", "arbitrary"),
            vmem_limit_bytes=vmem_limit,
        ),
    )(ids2d, table_p)

    return out_flat[:n].reshape(token_ids.shape + (d_model,))


def init_embedding_table(key, vocab, d_model, padding_idx=None):
    # Matches: self.embedding.weight.data.normal_(mean=0.0, std=d_model ** (-0.5))
    w = jax.random.normal(key, (vocab, d_model), dtype=jnp.float32) * (d_model ** -0.5)
    if padding_idx is not None:
        # nn.Embedding zeroes the padding_idx row at init
        w = w.at[padding_idx].set(0.0)
    return w


if __name__ == "__main__":
    key = jax.random.PRNGKey(0)
    k_ids, k_w = jax.random.split(key)

    B, S = 2, 8            # batch, sequence length
    vocab, d_model = 96, 128
    padding_idx = 0

    table = init_embedding_table(k_w, vocab, d_model, padding_idx=padding_idx)
    token_ids = jax.random.randint(k_ids, (B, S), 0, vocab, dtype=jnp.int32)

    ref_scaled = jnp.take(table, token_ids, axis=0) * math.sqrt(d_model)
    ref_plain = jnp.take(table, token_ids, axis=0)

    # 1) default path (single vocab chunk, single token block)
    out = jax.block_until_ready(embeddings_forward(token_ids, table))
    assert out.shape == (B, S, d_model), out.shape
    assert out.dtype == table.dtype
    assert jnp.allclose(out, ref_scaled, atol=1e-2, rtol=1e-2), "mismatch (scaled)"

    # 2) unscaled path
    out_ns = jax.block_until_ready(
        embeddings_forward(token_ids, table, scale_embedding=False))
    assert jnp.allclose(out_ns, ref_plain, atol=1e-2, rtol=1e-2), "mismatch (unscaled)"

    # 3) forced multi-chunk / multi-token-block path: exercises the vocab-chunk
    #    accumulator, table padding, and token padding/slicing.
    out_mc = jax.block_until_ready(
        embeddings_forward(token_ids, table, block_tokens=8, max_vocab_chunk=40))
    assert jnp.allclose(out_mc, ref_scaled, atol=1e-2, rtol=1e-2), "mismatch (chunked)"

    print("KERNEL_OK")
</pallas_src>

<mosaic_0001>
module attributes {stable_mosaic.version = 11 : i64} {
  func.func @_embedding_onehot_kernel(%arg0: i32, %arg1: i32, %arg2: memref<16x1xi32, #tpu.memory_space<vmem>>, %arg3: memref<96x128xf32, #tpu.memory_space<vmem>>, %arg4: memref<16x128xf32, #tpu.memory_space<vmem>>, %arg5: memref<16x128xf32, #tpu.memory_space<vmem>>) attributes {dimension_semantics = [#tpu.dimension_semantics<parallel>, #tpu.dimension_semantics<arbitrary>], iteration_bounds = array<i64: 1, 1>, scalar_prefetch = 0 : i64, scratch_operands = 1 : i64, tpu.core_type = #tpu.core_type<tc>, window_params = [{transform_indices = @transform_0, window_bounds = array<i64: 16, 1>}, {transform_indices = @transform_1, window_bounds = array<i64: 96, 128>}, {transform_indices = @transform_2, window_bounds = array<i64: 16, 128>}]} {
    %c0 = arith.constant 0 : index
    %c0_0 = arith.constant 0 : index
    %0 = vector.load %arg2[%c0, %c0_0] : memref<16x1xi32, #tpu.memory_space<vmem>>, vector<16x1xi32>
    %c96_i32 = arith.constant 96 : i32
    %1 = arith.muli %arg1, %c96_i32 : i32
    %2 = vector.broadcast %1 : i32 to vector<16x1xi32>
    %3 = arith.subi %0, %2 : vector<16x1xi32>
    %4 = tpu.iota {dimensions = array<i32: 1>} : vector<16x96xi32>
    %5 = vector.broadcast %3 : vector<16x1xi32> to vector<16x96xi32>
    %6 = arith.cmpi eq, %4, %5 : vector<16x96xi32>
    %7 = arith.extui %6 : vector<16x96xi1> to vector<16x96xi32>
    %8 = arith.sitofp %7 : vector<16x96xi32> to vector<16x96xf32>
    %c0_1 = arith.constant 0 : index
    %c0_2 = arith.constant 0 : index
    %9 = vector.load %arg3[%c0_1, %c0_2] : memref<96x128xf32, #tpu.memory_space<vmem>>, vector<96x128xf32>
    %cst = arith.constant dense<0.000000e+00> : vector<16x128xf32>
    %10 = tpu.matmul %8, %9, %cst {dimension_numbers = #tpu.dot_dimension_numbers<[1], [0], [0], [1], [0, 0, 1, 1], [], []>} : vector<16x96xf32>, vector<96x128xf32>, vector<16x128xf32> -> vector<16x128xf32>
    %cst_3 = arith.constant 11.3137083 : f32
    %11 = vector.broadcast %cst_3 : f32 to vector<16x128xf32>
    %12 = arith.mulf %10, %11 : vector<16x128xf32>
    %c0_4 = arith.constant 0 : index
    %c0_5 = arith.constant 0 : index
    %13 = vector.load %arg4[%c0_4, %c0_5] : memref<16x128xf32, #tpu.memory_space<vmem>>, vector<16x128xf32>
    tpu.vector_store %arg4[%c0_4, %c0_5], %12 {strides = array<i32>} : memref<16x128xf32, #tpu.memory_space<vmem>>, vector<16x128xf32>,
    return
  }
  func.func @transform_0(%arg0: i32, %arg1: i32) -> (i32, i32) {
    %c0_i32 = arith.constant 0 : i32
    %c0_i32_0 = arith.constant 0 : i32
    return %arg0, %c0_i32 : i32, i32
  }
  func.func @transform_1(%arg0: i32, %arg1: i32) -> (i32, i32) {
    %c0_i32 = arith.constant 0 : i32
    %c0_i32_0 = arith.constant 0 : i32
    return %arg1, %c0_i32 : i32, i32
  }
  func.func @transform_2(%arg0: i32, %arg1: i32) -> (i32, i32) {
    %c0_i32 = arith.constant 0 : i32
    %c0_i32_0 = arith.constant 0 : i32
    return %arg0, %c0_i32 : i32, i32
  }
}

</mosaic_0001>

<llo_original>
// kernel: tpu_custom_call.1
$region0: #{tpu_custom_call.1}
  #allocation0 [shape = 'u32[]', space=smem, size = 0x4, offset = 0x4, fixed_abs, tag = 'smem constant byte address 0x4 - core index']
  #allocation1 [shape = 'u32[144,128]{1,0:T(1,128)}', space=vmem, size = 0x12000, scoped, tag = 'internal scratch']
  #allocation2 [shape = 'f32[16,128]{1,0:T(8,128)}', space=vmem, size = 0x2000, scoped, tag = 'scratch operand']
  %s0 = inlined_call_operand.vmem [shape: s32[16,1], index: 0, kind: input, shape index: {}]
  %s1 = inlined_call_operand.hbm [shape: f32[96,128], index: 1, kind: input, shape index: {}]
  %s2 = inlined_call_operand.hbm [shape: f32[16,128], index: 2, kind: output, shape index: {}]
  %s3 = sld [smem:[#allocation0]]
  $region22: #{tpu_custom_call.1} parent=0
    _
  %s5 = ssub.s32 1, %s3
  %s6 = scalar_select 0, %s5, %s3
  $region1: #{tpu_custom_call.1} parent=0
    #allocation3 [shape = 'u8[49152]{0}', space=vmem, size = 0xc000, scoped, tag = 'input window, operand 1, single buffered']
    #allocation4 [shape = 's32[1]{0}', space=sflag, size = 0x4, scoped, tag = 'scoped memory for tpu_custom_call.1']
    #allocation5 [shape = 's32[1]{0}', space=sflag, size = 0x4, scoped, tag = 'scoped memory for tpu_custom_call.1']
    #allocation6 [shape = 'u8[8192]{0}', space=vmem, size = 0x2000, scoped, tag = 'output window, operand 0, single buffered']
    %7 = vsyncpa [#allocation4], 0
    %8 = vsyncpa [#allocation5], 0
    // Predicated region
    $region2: #{tpu_custom_call.1} parent=1 // pred_check
      _
    $region3: #{tpu_custom_call.1} parent=1 // pred_check_branch
      %10 = sbr.rel (0) target = $region5
    $region4: #{tpu_custom_call.1} parent=1 // pred_region
      _
    $region5: #{tpu_custom_call.1} parent=1 // pred_fallthru
      _
    // Predicated region
    $region6: #{tpu_custom_call.1} parent=1 // pred_check
      _
    $region7: #{tpu_custom_call.1} parent=1 // pred_check_branch
      %12 = sbr.rel (0) target = $region9
    $region8: #{tpu_custom_call.1} parent=1 // pred_region
      %s14 = ssub.s32 1536, 1536
      %15 = vsyncadd [#allocation4], %s14
      %s16 = sshll.u32 [#allocation3], 4
      %s17 = int_to_ptr.vmem [resolvable:$true] %s16
      %22 = dma.hbm_to_vmem [thread:$0]  %s1, 1536, %s17, [#allocation4], 128, 128, 8
    $region9: #{tpu_custom_call.1} parent=1 // pred_fallthru
      _
    // Predicated region
    $region10: #{tpu_custom_call.1} parent=1 // pred_check
      _
    $region11: #{tpu_custom_call.1} parent=1 // pred_check_branch
      %24 = sbr.rel (0) target = $region13
    $region12: #{tpu_custom_call.1} parent=1 // pred_region
      %25 = dma.done [#allocation4], 1536
    $region13: #{tpu_custom_call.1} parent=1 // pred_fallthru
      _
    %v26 = vld [vmem:[%s0] sm:$0xff]
    %v27 = vld [vmem:[%s0 + $0x8] sm:$0xff]
    %s28 = smul.u32 0, 96
    %v29 = vstv %s28
    %v30 = vsub.s32 %v26, %v29
    %v31 = vsub.s32 %v27, %v29
    %v32 = vlaneseq
    %v33 = vand.u32 %v32, 127
    %34 = vset.pattern.permute.xlu0 0
    %35 = vperm.xlu0 %34, %v30
    %v36 = vpop.permute.xlu0 %35
    %37 = vset.pattern.permute.xlu0 0
    %38 = vperm.xlu0 %37, %v31
    %v39 = vpop.permute.xlu0 %38
    %vm40 = vcmp.eq.s32.totalorder %v33, %v36
    %vm41 = vcmp.eq.s32.totalorder %v33, %v39
    %v42 = vsel %vm40, 1, 0
    %v43 = vsel %vm41, 1, 0
    %v44 = vcvt.s32.f32 %v42
    %v45 = vcvt.s32.f32 %v43
    %v46 = vld [vmem:[#allocation3] sm:$0xff]
    %v47 = vld [vmem:[#allocation3 + $0x8] sm:$0xff]
    %v48 = vld [vmem:[#allocation3 + $0x10] sm:$0xff]
    %v49 = vld [vmem:[#allocation3 + $0x18] sm:$0xff]
    %v50 = vld [vmem:[#allocation3 + $0x20] sm:$0xff]
    %v51 = vld [vmem:[#allocation3 + $0x28] sm:$0xff]
    %v52 = vld [vmem:[#allocation3 + $0x30] sm:$0xff]
    %v53 = vld [vmem:[#allocation3 + $0x38] sm:$0xff]
    %v54 = vld [vmem:[#allocation3 + $0x40] sm:$0xff]
    %v55 = vld [vmem:[#allocation3 + $0x48] sm:$0xff]
    %v56 = vld [vmem:[#allocation3 + $0x50] sm:$0xff]
    %v57 = vld [vmem:[#allocation3 + $0x58] sm:$0xff]
    %vm58 = vcmask 785408
    %v60 = vsel %vm58, %v44, 0
    %v63 = vsel %vm58, %v45, 0
    %65 = vmatprep.subr.mxu0 0.0
    %66 = vmatpush1.msra.mxu0 %v46
    %67 = vmatprep.subr.mxu0 0.0
    %68 = vmatpush1.msra.mxu0 %v47
    %69 = vmatprep.subr.mxu0 0.0
    %70 = vmatpush1.msra.mxu0 %v48
    %71 = vmatprep.subr.mxu0 0.0
    %72 = vmatpush1.msra.mxu0 %v49
    %73 = vmatprep.subr.mxu0 0.0
    %74 = vmatpush1.msra.mxu0 %v50
    %75 = vmatprep.subr.mxu0 0.0
    %76 = vmatpush1.msra.mxu0 %v51
    %77 = vmatprep.subr.mxu0 0.0
    %78 = vmatpush1.msra.mxu0 %v52
    %79 = vmatprep.subr.mxu0 0.0
    %80 = vmatpush1.msra.mxu0 %v53
    %81 = vmatprep.subr.mxu0 0.0
    %82 = vmatpush1.msra.mxu0 %v54
    %83 = vmatprep.subr.mxu0 0.0
    %84 = vmatpush1.msra.mxu0 %v55
    %85 = vmatprep.subr.mxu0 0.0
    %86 = vmatpush1.msra.mxu0 %v56
    %87 = vmatprep.subr.mxu0 0.0
    %88 = vmatpush1.msra.mxu0 %v57
    %89 = vmatprep.subr.mxu0 0.0
    %90 = vmatpush1.msra.mxu0 0.0
    %91 = vmatprep.subr.mxu0 0.0
    %92 = vmatpush1.msra.mxu0 0.0
    %93 = vmatprep.subr.mxu0 0.0
    %94 = vmatpush1.msra.mxu0 0.0
    %95 = vmatprep.subr.mxu0 0.0
    %96 = vmatpush1.msra.mxu0 0.0
    %97 = vmatprep.subr.mxu0 0.0
    %98 = vmatpush1.msra.mxu0 0.0
    %99 = vmatprep.subr.mxu0 0.0
    %100 = vmatpush1.msra.mxu0 0.0
    %101 = vmatprep.subr.mxu0 0.0
    %102 = vmatpush1.msra.mxu0 0.0
    %103 = vmatprep.subr.mxu0 0.0
    %104 = vmatpush1.msra.mxu0 0.0
    %105 = vmatprep.subr.mxu0 0.0
    %106 = vmatpush1.msra.mxu0 0.0
    %107 = vmatprep.subr.mxu0 0.0
    %108 = vmatpush1.msra.mxu0 0.0
    %109 = vmatprep.subr.mxu0 0.0
    %110 = vmatpush1.msra.mxu0 0.0
    %111 = vmatprep.subr.mxu0 0.0
    %112 = vmatpush1.msra.mxu0 0.0
    %113 = vmatprep.subr.mxu0 0.0
    %114 = vmatpush1.msra.mxu0 0.0
    %115 = vmatprep.subr.mxu0 0.0
    %116 = vmatpush1.msra.mxu0 0.0
    %117 = vmatprep.subr.mxu0 0.0
    %118 = vmatpush1.msra.mxu0 0.0
    %119 = vmatprep.subr.mxu0 0.0
    %120 = vmatpush1.msra.mxu0 0.0
    %121 = vmatprep.subr.mxu0 0.0
    %122 = vmatpush1.msra.mxu0 0.0
    %123 = vmatprep.subr.mxu0 0.0
    %124 = vmatpush1.msra.mxu0 0.0
    %125 = vmatprep.subr.mxu0 0.0
    %126 = vmatpush1.msra.mxu0 0.0
    %127 = vmatprep.subr.mxu0 0.0
    %128 = vmatpush1.msra.mxu0 0.0
    %129 = vmatprep.mubr.f32.mxu0 0.0
    %130 = vmatmul.mubr.f32.gmra.mrb[0].mxu0 %v60
    %v131 = vpop.f32.mrb[0].mxu0
    %v132 = vadd.f32 0.0, %v131
    %v133 = vpop.f32.mrb[0].mxu0
    %134 = vmatprep.mubr.f32.mxu0 0.0
    %135 = vmatmul.mubr.f32.gmra.mrb[0].mxu0 %v63
    %v136 = vpop.f32.mrb[0].mxu0
    %v137 = vadd.f32 0.0, %v136
    %v138 = vpop.f32.mrb[0].mxu0
    %139 = vdwg.mxu0
    %v140 = vmul.f32 %v132, 11.313708
    %v141 = vmul.f32 %v137, 11.313708
    %142 = vst [vmem:[#allocation6] sm:$0xff] %v140
    %143 = vst [vmem:[#allocation6 + $0x8] sm:$0xff] %v141
    // Predicated region
    $region14: #{tpu_custom_call.1} parent=1 // pred_check
      _
    $region15: #{tpu_custom_call.1} parent=1 // pred_check_branch
      %145 = sbr.rel (0) target = $region17
    $region16: #{tpu_custom_call.1} parent=1 // pred_region
      %s147 = ssub.s32 256, 256
      %148 = vsyncadd [#allocation5], %s147
      %s149 = sshll.u32 [#allocation6], 4
      %s150 = int_to_ptr.vmem [resolvable:$true] %s149
      %155 = dma.vmem_to_hbm [thread:$0]  %s150, 256, %s2, [#allocation5], 128, 128, 8
    $region17: #{tpu_custom_call.1} parent=1 // pred_fallthru
      _
    // Predicated region
    $region18: #{tpu_custom_call.1} parent=1 // pred_check
      _
    $region19: #{tpu_custom_call.1} parent=1 // pred_check_branch
      %157 = sbr.rel (0) target = $region21
    $region20: #{tpu_custom_call.1} parent=1 // pred_region
      %158 = dma.done [#allocation5], 256
    $region21: #{tpu_custom_call.1} parent=1 // pred_fallthru
      _
    %159 = vsyncpa [#allocation4], 1
    %160 = vsyncpa [#allocation5], 1

</llo_original>
